<compile_context>
chip_gen: v5e
topology: v5e:2x2
jax: 0.10.0
libtpu: 0.0.40
codegen_flags: <defaults>
</compile_context>

<pallas_src>
import jax
import jax.numpy as jnp
from jax.experimental import pallas as pl
from jax.experimental.pallas import tpu as pltpu

_LANE = 128
_MAX_DMA_CHUNKS = 8


def _prod(shape) -> int:
    p = 1
    for s in shape:
        p *= int(s)
    return p


def _pallas_copy_supported(dtype) -> bool:
    d = jnp.dtype(dtype)
    # Exclude sub-byte packed dtypes (int4/uint4/fp4) and bool; they route to
    # the metadata-only reshape fallback.
    if d.itemsize not in (1, 2, 4):
        return False
    name = d.name
    if "int4" in name or "uint4" in name or "float4" in name or name == "bool":
        return False
    return True


def _hbm_copy_kernel(x_hbm, o_hbm, sem):
    """Direct HBM->HBM DMA identity copy of a [R, 128] slab."""
    R = x_hbm.shape[0]
    n = sem.shape[0]
    # Static (trace-time) chunk boundaries; start every DMA, then wait on all,
    # so transfers overlap on the DMA engines.
    bounds = [(k * R) // n for k in range(n + 1)]
    copies = []
    for k in range(n):
        s, e = bounds[k], bounds[k + 1]
        if e > s:
            copies.append(
                pltpu.make_async_copy(
                    x_hbm.at[pl.ds(s, e - s), :],
                    o_hbm.at[pl.ds(s, e - s), :],
                    sem.at[k],
                )
            )
    for c in copies:
        c.start()
    for c in copies:
        c.wait()


def _materialize_copy(x2d: jax.Array) -> jax.Array:
    """Materialize a byte-identical copy of a lane-dense [R, 128] slab."""
    R, C = x2d.shape
    itemsize = jnp.dtype(x2d.dtype).itemsize
    n_chunks = max(1, min(_MAX_DMA_CHUNKS, R))
    return pl.pallas_call(
        _hbm_copy_kernel,
        out_shape=jax.ShapeDtypeStruct((R, C), x2d.dtype),
        in_specs=[pl.BlockSpec(memory_space=pl.ANY)],
        out_specs=pl.BlockSpec(memory_space=pl.ANY),
        scratch_shapes=[pltpu.SemaphoreType.DMA((n_chunks,))],
        cost_estimate=pl.CostEstimate(
            flops=0,
            transcendentals=0,
            bytes_accessed=2 * R * C * itemsize,
        ),
    )(x2d)


class View:
    """JAX/Pallas equivalent of the PyTorch View(nn.Module).

    Default path is jnp.reshape (metadata-only, exactly torch .view semantics
    on a contiguous tensor).  force_copy=True materializes the result through
    a Pallas HBM->HBM DMA kernel.
    """

    def __init__(self, size, *, force_copy: bool = False):
        if isinstance(size, int):
            size = (size,)
        self.size = tuple(int(s) for s in size)
        self.force_copy = bool(force_copy)

    def _resolve_size(self, total: int):
        size = list(self.size)
        if size.count(-1) > 1:
            raise ValueError("only one dimension can be inferred (-1)")
        if -1 in size:
            idx = size.index(-1)
            known = 1
            for j, s in enumerate(size):
                if j != idx:
                    known *= s
            if known == 0 or total % known != 0:
                raise ValueError(
                    f"cannot view tensor of {total} elements as {self.size}")
            size[idx] = total // known
        elif _prod(size) != total:
            raise ValueError(
                f"shape {self.size} is invalid for input of size {total}")
        return tuple(size)

    def __call__(self, tensor: jax.Array) -> jax.Array:
        total = _prod(tensor.shape)
        out_shape = self._resolve_size(total)

        # Fast (default) path: a view is metadata-only — zero HBM traffic.
        if not self.force_copy:
            return jnp.reshape(tensor, out_shape)

        # Forced materialization, but shape/dtype unsupported by the DMA path.
        if total == 0 or total % _LANE != 0 or not _pallas_copy_supported(tensor.dtype):
            return jnp.reshape(tensor, out_shape)

        # Lane-dense slab: last dim = one full vreg lane width (layout-friendly),
        # then a single-invocation HBM->HBM DMA copy.
        x2d = jnp.reshape(tensor, (total // _LANE, _LANE))
        y2d = _materialize_copy(x2d)
        return jnp.reshape(y2d, out_shape)


if __name__ == "__main__":
    key = jax.random.PRNGKey(0)
    # NCHW input, small shapes: batch=2, channels=4, spatial=16x16.
    x = jax.random.normal(key, (2, 4, 16, 16), dtype=jnp.float32)
    expected = jnp.reshape(x, (-1, 4 * 16 * 16))

    # 1) Default metadata-only path (typical VAAL usage: flatten feature maps).
    view = View((-1, 4 * 16 * 16))
    y = jax.block_until_ready(view(x))
    assert y.shape == (2, 1024), y.shape
    assert y.dtype == x.dtype
    assert bool(jnp.all(y == expected))

    # 2) Pallas HBM->HBM DMA path (forced materialization) on the same input.
    y_copy = jax.block_until_ready(View((-1, 4 * 16 * 16), force_copy=True)(x))
    assert y_copy.shape == (2, 1024), y_copy.shape
    assert y_copy.dtype == x.dtype
    assert bool(jnp.all(y_copy == expected))

    # 3) Non-multiple-of-128 element count -> reshape fallback even when forced.
    x_small = jax.random.normal(key, (3, 5), dtype=jnp.float32)
    y_small = jax.block_until_ready(View((5, 3), force_copy=True)(x_small))
    assert bool(jnp.all(y_small == jnp.reshape(x_small, (5, 3))))

    print("KERNEL_OK")
</pallas_src>

<mosaic_0001>
module attributes {stable_mosaic.version = 11 : i64} {
  func.func @_hbm_copy_kernel(%arg0: memref<16x128xf32, #tpu.memory_space<any>>, %arg1: memref<16x128xf32, #tpu.memory_space<any>>, %arg2: memref<8x!tpu.dma_semaphore, #tpu.memory_space<semaphore_mem>>) attributes {dimension_semantics = [], scalar_prefetch = 0 : i64, scratch_operands = 1 : i64, tpu.core_type = #tpu.core_type<tc>} {
    %c0_i32 = arith.constant 0 : i32
    %c0_i32_0 = arith.constant 0 : i32
    %c0_i32_1 = arith.constant 0 : i32
    %0 = tpu.memref_slice %arg0[%c0_i32_0, %c0_i32_1] : memref<16x128xf32, #tpu.memory_space<any>> -> memref<2x128xf32, #tpu.memory_space<any>>
    %c0_i32_2 = arith.constant 0 : i32
    %c0_i32_3 = arith.constant 0 : i32
    %1 = tpu.memref_slice %arg1[%c0_i32_2, %c0_i32_3] : memref<16x128xf32, #tpu.memory_space<any>> -> memref<2x128xf32, #tpu.memory_space<any>>
    %2 = tpu.memref_slice %arg2[%c0_i32] : memref<8x!tpu.dma_semaphore, #tpu.memory_space<semaphore_mem>> -> memref<1x!tpu.dma_semaphore, #tpu.memory_space<semaphore_mem>>
    %3 = tpu.memref_squeeze %2 : memref<1x!tpu.dma_semaphore, #tpu.memory_space<semaphore_mem>> -> memref<!tpu.dma_semaphore, #tpu.memory_space<semaphore_mem>>
    tpu.enqueue_dma source(%0 : memref<2x128xf32, #tpu.memory_space<any>>) target(%1 : memref<2x128xf32, #tpu.memory_space<any>>) target_semaphore(%3 : memref<!tpu.dma_semaphore, #tpu.memory_space<semaphore_mem>>)
    %c1_i32 = arith.constant 1 : i32
    %c2_i32 = arith.constant 2 : i32
    %c0_i32_4 = arith.constant 0 : i32
    %4 = tpu.memref_slice %arg0[%c2_i32, %c0_i32_4] : memref<16x128xf32, #tpu.memory_space<any>> -> memref<2x128xf32, #tpu.memory_space<any>>
    %c2_i32_5 = arith.constant 2 : i32
    %c0_i32_6 = arith.constant 0 : i32
    %5 = tpu.memref_slice %arg1[%c2_i32_5, %c0_i32_6] : memref<16x128xf32, #tpu.memory_space<any>> -> memref<2x128xf32, #tpu.memory_space<any>>
    %6 = tpu.memref_slice %arg2[%c1_i32] : memref<8x!tpu.dma_semaphore, #tpu.memory_space<semaphore_mem>> -> memref<1x!tpu.dma_semaphore, #tpu.memory_space<semaphore_mem>>
    %7 = tpu.memref_squeeze %6 : memref<1x!tpu.dma_semaphore, #tpu.memory_space<semaphore_mem>> -> memref<!tpu.dma_semaphore, #tpu.memory_space<semaphore_mem>>
    tpu.enqueue_dma source(%4 : memref<2x128xf32, #tpu.memory_space<any>>) target(%5 : memref<2x128xf32, #tpu.memory_space<any>>) target_semaphore(%7 : memref<!tpu.dma_semaphore, #tpu.memory_space<semaphore_mem>>)
    %c2_i32_7 = arith.constant 2 : i32
    %c4_i32 = arith.constant 4 : i32
    %c0_i32_8 = arith.constant 0 : i32
    %8 = tpu.memref_slice %arg0[%c4_i32, %c0_i32_8] : memref<16x128xf32, #tpu.memory_space<any>> -> memref<2x128xf32, #tpu.memory_space<any>>
    %c4_i32_9 = arith.constant 4 : i32
    %c0_i32_10 = arith.constant 0 : i32
    %9 = tpu.memref_slice %arg1[%c4_i32_9, %c0_i32_10] : memref<16x128xf32, #tpu.memory_space<any>> -> memref<2x128xf32, #tpu.memory_space<any>>
    %10 = tpu.memref_slice %arg2[%c2_i32_7] : memref<8x!tpu.dma_semaphore, #tpu.memory_space<semaphore_mem>> -> memref<1x!tpu.dma_semaphore, #tpu.memory_space<semaphore_mem>>
    %11 = tpu.memref_squeeze %10 : memref<1x!tpu.dma_semaphore, #tpu.memory_space<semaphore_mem>> -> memref<!tpu.dma_semaphore, #tpu.memory_space<semaphore_mem>>
    tpu.enqueue_dma source(%8 : memref<2x128xf32, #tpu.memory_space<any>>) target(%9 : memref<2x128xf32, #tpu.memory_space<any>>) target_semaphore(%11 : memref<!tpu.dma_semaphore, #tpu.memory_space<semaphore_mem>>)
    %c3_i32 = arith.constant 3 : i32
    %c6_i32 = arith.constant 6 : i32
    %c0_i32_11 = arith.constant 0 : i32
    %12 = tpu.memref_slice %arg0[%c6_i32, %c0_i32_11] : memref<16x128xf32, #tpu.memory_space<any>> -> memref<2x128xf32, #tpu.memory_space<any>>
    %c6_i32_12 = arith.constant 6 : i32
    %c0_i32_13 = arith.constant 0 : i32
    %13 = tpu.memref_slice %arg1[%c6_i32_12, %c0_i32_13] : memref<16x128xf32, #tpu.memory_space<any>> -> memref<2x128xf32, #tpu.memory_space<any>>
    %14 = tpu.memref_slice %arg2[%c3_i32] : memref<8x!tpu.dma_semaphore, #tpu.memory_space<semaphore_mem>> -> memref<1x!tpu.dma_semaphore, #tpu.memory_space<semaphore_mem>>
    %15 = tpu.memref_squeeze %14 : memref<1x!tpu.dma_semaphore, #tpu.memory_space<semaphore_mem>> -> memref<!tpu.dma_semaphore, #tpu.memory_space<semaphore_mem>>
    tpu.enqueue_dma source(%12 : memref<2x128xf32, #tpu.memory_space<any>>) target(%13 : memref<2x128xf32, #tpu.memory_space<any>>) target_semaphore(%15 : memref<!tpu.dma_semaphore, #tpu.memory_space<semaphore_mem>>)
    %c4_i32_14 = arith.constant 4 : i32
    %c8_i32 = arith.constant 8 : i32
    %c0_i32_15 = arith.constant 0 : i32
    %16 = tpu.memref_slice %arg0[%c8_i32, %c0_i32_15] : memref<16x128xf32, #tpu.memory_space<any>> -> memref<2x128xf32, #tpu.memory_space<any>>
    %c8_i32_16 = arith.constant 8 : i32
    %c0_i32_17 = arith.constant 0 : i32
    %17 = tpu.memref_slice %arg1[%c8_i32_16, %c0_i32_17] : memref<16x128xf32, #tpu.memory_space<any>> -> memref<2x128xf32, #tpu.memory_space<any>>
    %18 = tpu.memref_slice %arg2[%c4_i32_14] : memref<8x!tpu.dma_semaphore, #tpu.memory_space<semaphore_mem>> -> memref<1x!tpu.dma_semaphore, #tpu.memory_space<semaphore_mem>>
    %19 = tpu.memref_squeeze %18 : memref<1x!tpu.dma_semaphore, #tpu.memory_space<semaphore_mem>> -> memref<!tpu.dma_semaphore, #tpu.memory_space<semaphore_mem>>
    tpu.enqueue_dma source(%16 : memref<2x128xf32, #tpu.memory_space<any>>) target(%17 : memref<2x128xf32, #tpu.memory_space<any>>) target_semaphore(%19 : memref<!tpu.dma_semaphore, #tpu.memory_space<semaphore_mem>>)
    %c5_i32 = arith.constant 5 : i32
    %c10_i32 = arith.constant 10 : i32
    %c0_i32_18 = arith.constant 0 : i32
    %20 = tpu.memref_slice %arg0[%c10_i32, %c0_i32_18] : memref<16x128xf32, #tpu.memory_space<any>> -> memref<2x128xf32, #tpu.memory_space<any>>
    %c10_i32_19 = arith.constant 10 : i32
    %c0_i32_20 = arith.constant 0 : i32
    %21 = tpu.memref_slice %arg1[%c10_i32_19, %c0_i32_20] : memref<16x128xf32, #tpu.memory_space<any>> -> memref<2x128xf32, #tpu.memory_space<any>>
    %22 = tpu.memref_slice %arg2[%c5_i32] : memref<8x!tpu.dma_semaphore, #tpu.memory_space<semaphore_mem>> -> memref<1x!tpu.dma_semaphore, #tpu.memory_space<semaphore_mem>>
    %23 = tpu.memref_squeeze %22 : memref<1x!tpu.dma_semaphore, #tpu.memory_space<semaphore_mem>> -> memref<!tpu.dma_semaphore, #tpu.memory_space<semaphore_mem>>
    tpu.enqueue_dma source(%20 : memref<2x128xf32, #tpu.memory_space<any>>) target(%21 : memref<2x128xf32, #tpu.memory_space<any>>) target_semaphore(%23 : memref<!tpu.dma_semaphore, #tpu.memory_space<semaphore_mem>>)
    %c6_i32_21 = arith.constant 6 : i32
    %c12_i32 = arith.constant 12 : i32
    %c0_i32_22 = arith.constant 0 : i32
    %24 = tpu.memref_slice %arg0[%c12_i32, %c0_i32_22] : memref<16x128xf32, #tpu.memory_space<any>> -> memref<2x128xf32, #tpu.memory_space<any>>
    %c12_i32_23 = arith.constant 12 : i32
    %c0_i32_24 = arith.constant 0 : i32
    %25 = tpu.memref_slice %arg1[%c12_i32_23, %c0_i32_24] : memref<16x128xf32, #tpu.memory_space<any>> -> memref<2x128xf32, #tpu.memory_space<any>>
    %26 = tpu.memref_slice %arg2[%c6_i32_21] : memref<8x!tpu.dma_semaphore, #tpu.memory_space<semaphore_mem>> -> memref<1x!tpu.dma_semaphore, #tpu.memory_space<semaphore_mem>>
    %27 = tpu.memref_squeeze %26 : memref<1x!tpu.dma_semaphore, #tpu.memory_space<semaphore_mem>> -> memref<!tpu.dma_semaphore, #tpu.memory_space<semaphore_mem>>
    tpu.enqueue_dma source(%24 : memref<2x128xf32, #tpu.memory_space<any>>) target(%25 : memref<2x128xf32, #tpu.memory_space<any>>) target_semaphore(%27 : memref<!tpu.dma_semaphore, #tpu.memory_space<semaphore_mem>>)
    %c7_i32 = arith.constant 7 : i32
    %c14_i32 = arith.constant 14 : i32
    %c0_i32_25 = arith.constant 0 : i32
    %28 = tpu.memref_slice %arg0[%c14_i32, %c0_i32_25] : memref<16x128xf32, #tpu.memory_space<any>> -> memref<2x128xf32, #tpu.memory_space<any>>
    %c14_i32_26 = arith.constant 14 : i32
    %c0_i32_27 = arith.constant 0 : i32
    %29 = tpu.memref_slice %arg1[%c14_i32_26, %c0_i32_27] : memref<16x128xf32, #tpu.memory_space<any>> -> memref<2x128xf32, #tpu.memory_space<any>>
    %30 = tpu.memref_slice %arg2[%c7_i32] : memref<8x!tpu.dma_semaphore, #tpu.memory_space<semaphore_mem>> -> memref<1x!tpu.dma_semaphore, #tpu.memory_space<semaphore_mem>>
    %31 = tpu.memref_squeeze %30 : memref<1x!tpu.dma_semaphore, #tpu.memory_space<semaphore_mem>> -> memref<!tpu.dma_semaphore, #tpu.memory_space<semaphore_mem>>
    tpu.enqueue_dma source(%28 : memref<2x128xf32, #tpu.memory_space<any>>) target(%29 : memref<2x128xf32, #tpu.memory_space<any>>) target_semaphore(%31 : memref<!tpu.dma_semaphore, #tpu.memory_space<semaphore_mem>>)
    %c0_i32_28 = arith.constant 0 : i32
    %c0_i32_29 = arith.constant 0 : i32
    %c0_i32_30 = arith.constant 0 : i32
    %32 = tpu.memref_slice %arg0[%c0_i32_29, %c0_i32_30] : memref<16x128xf32, #tpu.memory_space<any>> -> memref<2x128xf32, #tpu.memory_space<any>>
    %c0_i32_31 = arith.constant 0 : i32
    %c0_i32_32 = arith.constant 0 : i32
    %33 = tpu.memref_slice %arg1[%c0_i32_31, %c0_i32_32] : memref<16x128xf32, #tpu.memory_space<any>> -> memref<2x128xf32, #tpu.memory_space<any>>
    %34 = tpu.memref_slice %arg2[%c0_i32_28] : memref<8x!tpu.dma_semaphore, #tpu.memory_space<semaphore_mem>> -> memref<1x!tpu.dma_semaphore, #tpu.memory_space<semaphore_mem>>
    %35 = tpu.memref_squeeze %34 : memref<1x!tpu.dma_semaphore, #tpu.memory_space<semaphore_mem>> -> memref<!tpu.dma_semaphore, #tpu.memory_space<semaphore_mem>>
    tpu.wait_dma2 semaphore(%35 : memref<!tpu.dma_semaphore, #tpu.memory_space<semaphore_mem>>) src(%32 : memref<2x128xf32, #tpu.memory_space<any>>) dst(%33 : memref<2x128xf32, #tpu.memory_space<any>>)
    %c1_i32_33 = arith.constant 1 : i32
    %c2_i32_34 = arith.constant 2 : i32
    %c0_i32_35 = arith.constant 0 : i32
    %36 = tpu.memref_slice %arg0[%c2_i32_34, %c0_i32_35] : memref<16x128xf32, #tpu.memory_space<any>> -> memref<2x128xf32, #tpu.memory_space<any>>
    %c2_i32_36 = arith.constant 2 : i32
    %c0_i32_37 = arith.constant 0 : i32
    %37 = tpu.memref_slice %arg1[%c2_i32_36, %c0_i32_37] : memref<16x128xf32, #tpu.memory_space<any>> -> memref<2x128xf32, #tpu.memory_space<any>>
    %38 = tpu.memref_slice %arg2[%c1_i32_33] : memref<8x!tpu.dma_semaphore, #tpu.memory_space<semaphore_mem>> -> memref<1x!tpu.dma_semaphore, #tpu.memory_space<semaphore_mem>>
    %39 = tpu.memref_squeeze %38 : memref<1x!tpu.dma_semaphore, #tpu.memory_space<semaphore_mem>> -> memref<!tpu.dma_semaphore, #tpu.memory_space<semaphore_mem>>
    tpu.wait_dma2 semaphore(%39 : memref<!tpu.dma_semaphore, #tpu.memory_space<semaphore_mem>>) src(%36 : memref<2x128xf32, #tpu.memory_space<any>>) dst(%37 : memref<2x128xf32, #tpu.memory_space<any>>)
    %c2_i32_38 = arith.constant 2 : i32
    %c4_i32_39 = arith.constant 4 : i32
    %c0_i32_40 = arith.constant 0 : i32
    %40 = tpu.memref_slice %arg0[%c4_i32_39, %c0_i32_40] : memref<16x128xf32, #tpu.memory_space<any>> -> memref<2x128xf32, #tpu.memory_space<any>>
    %c4_i32_41 = arith.constant 4 : i32
    %c0_i32_42 = arith.constant 0 : i32
    %41 = tpu.memref_slice %arg1[%c4_i32_41, %c0_i32_42] : memref<16x128xf32, #tpu.memory_space<any>> -> memref<2x128xf32, #tpu.memory_space<any>>
    %42 = tpu.memref_slice %arg2[%c2_i32_38] : memref<8x!tpu.dma_semaphore, #tpu.memory_space<semaphore_mem>> -> memref<1x!tpu.dma_semaphore, #tpu.memory_space<semaphore_mem>>
    %43 = tpu.memref_squeeze %42 : memref<1x!tpu.dma_semaphore, #tpu.memory_space<semaphore_mem>> -> memref<!tpu.dma_semaphore, #tpu.memory_space<semaphore_mem>>
    tpu.wait_dma2 semaphore(%43 : memref<!tpu.dma_semaphore, #tpu.memory_space<semaphore_mem>>) src(%40 : memref<2x128xf32, #tpu.memory_space<any>>) dst(%41 : memref<2x128xf32, #tpu.memory_space<any>>)
    %c3_i32_43 = arith.constant 3 : i32
    %c6_i32_44 = arith.constant 6 : i32
    %c0_i32_45 = arith.constant 0 : i32
    %44 = tpu.memref_slice %arg0[%c6_i32_44, %c0_i32_45] : memref<16x128xf32, #tpu.memory_space<any>> -> memref<2x128xf32, #tpu.memory_space<any>>
    %c6_i32_46 = arith.constant 6 : i32
    %c0_i32_47 = arith.constant 0 : i32
    %45 = tpu.memref_slice %arg1[%c6_i32_46, %c0_i32_47] : memref<16x128xf32, #tpu.memory_space<any>> -> memref<2x128xf32, #tpu.memory_space<any>>
    %46 = tpu.memref_slice %arg2[%c3_i32_43] : memref<8x!tpu.dma_semaphore, #tpu.memory_space<semaphore_mem>> -> memref<1x!tpu.dma_semaphore, #tpu.memory_space<semaphore_mem>>
    %47 = tpu.memref_squeeze %46 : memref<1x!tpu.dma_semaphore, #tpu.memory_space<semaphore_mem>> -> memref<!tpu.dma_semaphore, #tpu.memory_space<semaphore_mem>>
    tpu.wait_dma2 semaphore(%47 : memref<!tpu.dma_semaphore, #tpu.memory_space<semaphore_mem>>) src(%44 : memref<2x128xf32, #tpu.memory_space<any>>) dst(%45 : memref<2x128xf32, #tpu.memory_space<any>>)
    %c4_i32_48 = arith.constant 4 : i32
    %c8_i32_49 = arith.constant 8 : i32
    %c0_i32_50 = arith.constant 0 : i32
    %48 = tpu.memref_slice %arg0[%c8_i32_49, %c0_i32_50] : memref<16x128xf32, #tpu.memory_space<any>> -> memref<2x128xf32, #tpu.memory_space<any>>
    %c8_i32_51 = arith.constant 8 : i32
    %c0_i32_52 = arith.constant 0 : i32
    %49 = tpu.memref_slice %arg1[%c8_i32_51, %c0_i32_52] : memref<16x128xf32, #tpu.memory_space<any>> -> memref<2x128xf32, #tpu.memory_space<any>>
    %50 = tpu.memref_slice %arg2[%c4_i32_48] : memref<8x!tpu.dma_semaphore, #tpu.memory_space<semaphore_mem>> -> memref<1x!tpu.dma_semaphore, #tpu.memory_space<semaphore_mem>>
    %51 = tpu.memref_squeeze %50 : memref<1x!tpu.dma_semaphore, #tpu.memory_space<semaphore_mem>> -> memref<!tpu.dma_semaphore, #tpu.memory_space<semaphore_mem>>
    tpu.wait_dma2 semaphore(%51 : memref<!tpu.dma_semaphore, #tpu.memory_space<semaphore_mem>>) src(%48 : memref<2x128xf32, #tpu.memory_space<any>>) dst(%49 : memref<2x128xf32, #tpu.memory_space<any>>)
    %c5_i32_53 = arith.constant 5 : i32
    %c10_i32_54 = arith.constant 10 : i32
    %c0_i32_55 = arith.constant 0 : i32
    %52 = tpu.memref_slice %arg0[%c10_i32_54, %c0_i32_55] : memref<16x128xf32, #tpu.memory_space<any>> -> memref<2x128xf32, #tpu.memory_space<any>>
    %c10_i32_56 = arith.constant 10 : i32
    %c0_i32_57 = arith.constant 0 : i32
    %53 = tpu.memref_slice %arg1[%c10_i32_56, %c0_i32_57] : memref<16x128xf32, #tpu.memory_space<any>> -> memref<2x128xf32, #tpu.memory_space<any>>
    %54 = tpu.memref_slice %arg2[%c5_i32_53] : memref<8x!tpu.dma_semaphore, #tpu.memory_space<semaphore_mem>> -> memref<1x!tpu.dma_semaphore, #tpu.memory_space<semaphore_mem>>
    %55 = tpu.memref_squeeze %54 : memref<1x!tpu.dma_semaphore, #tpu.memory_space<semaphore_mem>> -> memref<!tpu.dma_semaphore, #tpu.memory_space<semaphore_mem>>
    tpu.wait_dma2 semaphore(%55 : memref<!tpu.dma_semaphore, #tpu.memory_space<semaphore_mem>>) src(%52 : memref<2x128xf32, #tpu.memory_space<any>>) dst(%53 : memref<2x128xf32, #tpu.memory_space<any>>)
    %c6_i32_58 = arith.constant 6 : i32
    %c12_i32_59 = arith.constant 12 : i32
    %c0_i32_60 = arith.constant 0 : i32
    %56 = tpu.memref_slice %arg0[%c12_i32_59, %c0_i32_60] : memref<16x128xf32, #tpu.memory_space<any>> -> memref<2x128xf32, #tpu.memory_space<any>>
    %c12_i32_61 = arith.constant 12 : i32
    %c0_i32_62 = arith.constant 0 : i32
    %57 = tpu.memref_slice %arg1[%c12_i32_61, %c0_i32_62] : memref<16x128xf32, #tpu.memory_space<any>> -> memref<2x128xf32, #tpu.memory_space<any>>
    %58 = tpu.memref_slice %arg2[%c6_i32_58] : memref<8x!tpu.dma_semaphore, #tpu.memory_space<semaphore_mem>> -> memref<1x!tpu.dma_semaphore, #tpu.memory_space<semaphore_mem>>
    %59 = tpu.memref_squeeze %58 : memref<1x!tpu.dma_semaphore, #tpu.memory_space<semaphore_mem>> -> memref<!tpu.dma_semaphore, #tpu.memory_space<semaphore_mem>>
    tpu.wait_dma2 semaphore(%59 : memref<!tpu.dma_semaphore, #tpu.memory_space<semaphore_mem>>) src(%56 : memref<2x128xf32, #tpu.memory_space<any>>) dst(%57 : memref<2x128xf32, #tpu.memory_space<any>>)
    %c7_i32_63 = arith.constant 7 : i32
    %c14_i32_64 = arith.constant 14 : i32
    %c0_i32_65 = arith.constant 0 : i32
    %60 = tpu.memref_slice %arg0[%c14_i32_64, %c0_i32_65] : memref<16x128xf32, #tpu.memory_space<any>> -> memref<2x128xf32, #tpu.memory_space<any>>
    %c14_i32_66 = arith.constant 14 : i32
    %c0_i32_67 = arith.constant 0 : i32
    %61 = tpu.memref_slice %arg1[%c14_i32_66, %c0_i32_67] : memref<16x128xf32, #tpu.memory_space<any>> -> memref<2x128xf32, #tpu.memory_space<any>>
    %62 = tpu.memref_slice %arg2[%c7_i32_63] : memref<8x!tpu.dma_semaphore, #tpu.memory_space<semaphore_mem>> -> memref<1x!tpu.dma_semaphore, #tpu.memory_space<semaphore_mem>>
    %63 = tpu.memref_squeeze %62 : memref<1x!tpu.dma_semaphore, #tpu.memory_space<semaphore_mem>> -> memref<!tpu.dma_semaphore, #tpu.memory_space<semaphore_mem>>
    tpu.wait_dma2 semaphore(%63 : memref<!tpu.dma_semaphore, #tpu.memory_space<semaphore_mem>>) src(%60 : memref<2x128xf32, #tpu.memory_space<any>>) dst(%61 : memref<2x128xf32, #tpu.memory_space<any>>)
    return
  }
}

</mosaic_0001>

<llo_original>
// kernel: tpu_custom_call.1
$region0: #{tpu_custom_call.1}
  #allocation0 [shape = 'u32[]', space=smem, size = 0x4, offset = 0x4, fixed_abs, tag = 'smem constant byte address 0x4 - core index']
  #allocation1 [shape = 'u32[72,128]{1,0:T(1,128)}', space=vmem, size = 0x9000, scoped, tag = 'internal scratch']
  #allocation2 [shape = 's32[8]{0}', space=sflag, size = 0x20, scoped, tag = 'scratch operand']
  #allocation3 [shape = 's32[]', space=sflag, size = 0x4, offset = 0, fixed_abs, tag = 'sflag constant byte address 0x0 - dummy sync flag']
  #allocation4 [shape = 'u32[0]{0}', space=smem, size = 0, offset = 0, fixed_abs, tag = 'smem constant byte address 0x0 - null']
  #allocation5 [shape = 's32[]', space=sflag, size = 0x4, offset = 0, fixed_abs, tag = 'sflag constant byte address 0x0 - dummy sync flag']
  #allocation6 [shape = 'u32[0]{0}', space=smem, size = 0, offset = 0, fixed_abs, tag = 'smem constant byte address 0x0 - null']
  #allocation7 [shape = 's32[]', space=sflag, size = 0x4, offset = 0, fixed_abs, tag = 'sflag constant byte address 0x0 - dummy sync flag']
  #allocation8 [shape = 'u32[0]{0}', space=smem, size = 0, offset = 0, fixed_abs, tag = 'smem constant byte address 0x0 - null']
  #allocation9 [shape = 's32[]', space=sflag, size = 0x4, offset = 0, fixed_abs, tag = 'sflag constant byte address 0x0 - dummy sync flag']
  #allocation10 [shape = 'u32[0]{0}', space=smem, size = 0, offset = 0, fixed_abs, tag = 'smem constant byte address 0x0 - null']
  #allocation11 [shape = 's32[]', space=sflag, size = 0x4, offset = 0, fixed_abs, tag = 'sflag constant byte address 0x0 - dummy sync flag']
  #allocation12 [shape = 'u32[0]{0}', space=smem, size = 0, offset = 0, fixed_abs, tag = 'smem constant byte address 0x0 - null']
  #allocation13 [shape = 's32[]', space=sflag, size = 0x4, offset = 0, fixed_abs, tag = 'sflag constant byte address 0x0 - dummy sync flag']
  #allocation14 [shape = 'u32[0]{0}', space=smem, size = 0, offset = 0, fixed_abs, tag = 'smem constant byte address 0x0 - null']
  #allocation15 [shape = 's32[]', space=sflag, size = 0x4, offset = 0, fixed_abs, tag = 'sflag constant byte address 0x0 - dummy sync flag']
  #allocation16 [shape = 'u32[0]{0}', space=smem, size = 0, offset = 0, fixed_abs, tag = 'smem constant byte address 0x0 - null']
  #allocation17 [shape = 's32[]', space=sflag, size = 0x4, offset = 0, fixed_abs, tag = 'sflag constant byte address 0x0 - dummy sync flag']
  #allocation18 [shape = 'u32[0]{0}', space=smem, size = 0, offset = 0, fixed_abs, tag = 'smem constant byte address 0x0 - null']
  %s0 = inlined_call_operand.hbm [shape: f32[16,128], index: 0, kind: input, shape index: {}]
  %s1 = inlined_call_operand.hbm [shape: f32[16,128], index: 1, kind: output, shape index: {}]
  %s2 = sld [smem:[#allocation0]]
  $region2: #{tpu_custom_call.1} parent=0
    _
  %s4 = ssub.s32 1, %s2
  %s5 = scalar_select 0, %s4, %s2
  %s7 = sshll.u32 1, 14
  %s8 = sxor.u32 4294967295, %s7
  %s10 = sshll.u32 %s0, 4
  %s11 = int_to_ptr.hbm [resolvable:$true] %s10
  %s12 = sshll.u32 %s1, 4
  %s13 = int_to_ptr.hbm [resolvable:$true] %s12
  %16 = dma.general %s11, 32, %s13, [#allocation2], [#allocation3], [#allocation4], 0, 0
  %s17 = scalar_lea.hbm %s0, 2
  %s18 = scalar_lea.hbm %s1, 2
  %s19 = scalar_lea.sflag [#allocation2], 1
  %s21 = sshll.u32 1, 14
  %s22 = sxor.u32 4294967295, %s21
  %s24 = sshll.u32 %s17, 4
  %s25 = int_to_ptr.hbm [resolvable:$true] %s24
  %s26 = sshll.u32 %s18, 4
  %s27 = int_to_ptr.hbm [resolvable:$true] %s26
  %30 = dma.general %s25, 32, %s27, %s19, [#allocation5], [#allocation6], 0, 0
  %s31 = scalar_lea.hbm %s0, 4
  %s32 = scalar_lea.hbm %s1, 4
  %s33 = scalar_lea.sflag [#allocation2], 2
  %s35 = sshll.u32 1, 14
  %s36 = sxor.u32 4294967295, %s35
  %s38 = sshll.u32 %s31, 4
  %s39 = int_to_ptr.hbm [resolvable:$true] %s38
  %s40 = sshll.u32 %s32, 4
  %s41 = int_to_ptr.hbm [resolvable:$true] %s40
  %44 = dma.general %s39, 32, %s41, %s33, [#allocation7], [#allocation8], 0, 0
  %s45 = scalar_lea.hbm %s0, 6
  %s46 = scalar_lea.hbm %s1, 6
  %s47 = scalar_lea.sflag [#allocation2], 3
  %s49 = sshll.u32 1, 14
  %s50 = sxor.u32 4294967295, %s49
  %s52 = sshll.u32 %s45, 4
  %s53 = int_to_ptr.hbm [resolvable:$true] %s52
  %s54 = sshll.u32 %s46, 4
  %s55 = int_to_ptr.hbm [resolvable:$true] %s54
  %58 = dma.general %s53, 32, %s55, %s47, [#allocation9], [#allocation10], 0, 0
  %s59 = scalar_lea.hbm %s0, 8
  %s60 = scalar_lea.hbm %s1, 8
  %s61 = scalar_lea.sflag [#allocation2], 4
  %s63 = sshll.u32 1, 14
  %s64 = sxor.u32 4294967295, %s63
  %s66 = sshll.u32 %s59, 4
  %s67 = int_to_ptr.hbm [resolvable:$true] %s66
  %s68 = sshll.u32 %s60, 4
  %s69 = int_to_ptr.hbm [resolvable:$true] %s68
  %72 = dma.general %s67, 32, %s69, %s61, [#allocation11], [#allocation12], 0, 0
  %s73 = scalar_lea.hbm %s0, 10
  %s74 = scalar_lea.hbm %s1, 10
  %s75 = scalar_lea.sflag [#allocation2], 5
  %s77 = sshll.u32 1, 14
  %s78 = sxor.u32 4294967295, %s77
  %s80 = sshll.u32 %s73, 4
  %s81 = int_to_ptr.hbm [resolvable:$true] %s80
  %s82 = sshll.u32 %s74, 4
  %s83 = int_to_ptr.hbm [resolvable:$true] %s82
  %86 = dma.general %s81, 32, %s83, %s75, [#allocation13], [#allocation14], 0, 0
  %s87 = scalar_lea.hbm %s0, 12
  %s88 = scalar_lea.hbm %s1, 12
  %s89 = scalar_lea.sflag [#allocation2], 6
  %s91 = sshll.u32 1, 14
  %s92 = sxor.u32 4294967295, %s91
  %s94 = sshll.u32 %s87, 4
  %s95 = int_to_ptr.hbm [resolvable:$true] %s94
  %s96 = sshll.u32 %s88, 4
  %s97 = int_to_ptr.hbm [resolvable:$true] %s96
  %100 = dma.general %s95, 32, %s97, %s89, [#allocation15], [#allocation16], 0, 0
  %s101 = scalar_lea.hbm %s0, 14
  %s102 = scalar_lea.hbm %s1, 14
  %s103 = scalar_lea.sflag [#allocation2], 7
  %s105 = sshll.u32 1, 14
  %s106 = sxor.u32 4294967295, %s105
  %s108 = sshll.u32 %s101, 4
  %s109 = int_to_ptr.hbm [resolvable:$true] %s108
  %s110 = sshll.u32 %s102, 4
  %s111 = int_to_ptr.hbm [resolvable:$true] %s110
  %114 = dma.general %s109, 32, %s111, %s103, [#allocation17], [#allocation18], 0, 0
  %s115 = smul.u32 2, 1
  %s116 = sshll.u32 %s115, 4
  %117 = dma.done [#allocation2], %s116
  %s118 = sshll.u32 %s115, 4
  %119 = dma.done %s19, %s118
  %s120 = sshll.u32 %s115, 4
  %121 = dma.done %s33, %s120
  %s122 = sshll.u32 %s115, 4
  %123 = dma.done %s47, %s122
  %s124 = sshll.u32 %s115, 4
  %125 = dma.done %s61, %s124
  %s126 = sshll.u32 %s115, 4
  %127 = dma.done %s75, %s126
  %s128 = sshll.u32 %s115, 4
  %129 = dma.done %s89, %s128
  %s130 = sshll.u32 %s115, 4
  %131 = dma.done %s103, %s130
  %132 = vsyncmov [#allocation2]
  %s133 = vpop.sfrf %132
  %p134 = scmp.eq.s32.totalorder %s133, 0
  %p135 = pneg %p134
  %137 = shalt.err (%p135)
  %s138 = scalar_lea.sflag [#allocation2], 1
  %139 = vsyncmov %s138
  %s140 = vpop.sfrf %139
  %p141 = scmp.eq.s32.totalorder %s140, 0
  %p142 = pneg %p141
  %144 = shalt.err (%p142)
  %s145 = scalar_lea.sflag [#allocation2], 2
  %146 = vsyncmov %s145
  %s147 = vpop.sfrf %146
  %p148 = scmp.eq.s32.totalorder %s147, 0
  %p149 = pneg %p148
  %151 = shalt.err (%p149)
  %s152 = scalar_lea.sflag [#allocation2], 3
  %153 = vsyncmov %s152
  %s154 = vpop.sfrf %153
  %p155 = scmp.eq.s32.totalorder %s154, 0
  %p156 = pneg %p155
  %158 = shalt.err (%p156)
  %s159 = scalar_lea.sflag [#allocation2], 4
  %160 = vsyncmov %s159
  %s161 = vpop.sfrf %160
  %p162 = scmp.eq.s32.totalorder %s161, 0
  %p163 = pneg %p162
  %165 = shalt.err (%p163)
  %s166 = scalar_lea.sflag [#allocation2], 5
  %167 = vsyncmov %s166
  %s168 = vpop.sfrf %167
  %p169 = scmp.eq.s32.totalorder %s168, 0
  %p170 = pneg %p169
  %172 = shalt.err (%p170)
  %s173 = scalar_lea.sflag [#allocation2], 6
  %174 = vsyncmov %s173
  %s175 = vpop.sfrf %174
  %p176 = scmp.eq.s32.totalorder %s175, 0
  %p177 = pneg %p176
  %179 = shalt.err (%p177)
  %s180 = scalar_lea.sflag [#allocation2], 7
  %181 = vsyncmov %s180
  %s182 = vpop.sfrf %181
  %p183 = scmp.eq.s32.totalorder %s182, 0
  %p184 = pneg %p183
  %186 = shalt.err (%p184)

</llo_original>
